<compile_context>
chip_gen: v7x
topology: tpu7x:2x2x1
jax: 0.10.0
libtpu: 0.0.40
codegen_flags: <defaults>
</compile_context>

<pallas_src>
import jax
import jax.numpy as jnp
from jax.experimental import pallas as pl
from jax.experimental.pallas import tpu as pltpu


def _make_mlp_kernel(n_layers: int):
    """Kernel computing the full Linear/ReLU/.../ELUPlus stack on a (f_in, tile_n) tile."""

    def kernel(*refs):
        x_ref = refs[0]
        o_ref = refs[-1]
        param_refs = refs[1:-1]  # alternating (W, b) pairs, W: (f_out, f_in), b: (f_out, 1)

        # Hoist all (tiny, grid-invariant) weight/bias loads to the top.
        ws = [param_refs[2 * li][...] for li in range(n_layers)]
        bs = [param_refs[2 * li + 1][...] for li in range(n_layers)]

        a = x_ref[...]  # (f_in, tile_n) float32, samples on lanes
        for li in range(n_layers):
            a = jnp.dot(ws[li], a, preferred_element_type=jnp.float32) + bs[li]
            if li < n_layers - 1:
                a = jnp.maximum(a, 0.0)                                   # ReLU
            else:
                # ELUPlus: ELU(a) + 1.05 (alpha = 1). exp(min(a, 0)) keeps the EUP input
                # bounded (no inf in the discarded branch / padded lanes).
                a = jnp.where(a > 0.0, a, jnp.exp(jnp.minimum(a, 0.0)) - 1.0) + 1.05
        o_ref[...] = a.astype(o_ref.dtype)

    return kernel


def integrand_net_pallas(x, h, params, *, max_tile_n=1024):
    """Forward pass of IntegrandNet.

    Args:
      x: (B, D) float32
      h: (B, D * n_param_per_dim) float32
      params: list of (W, b) with W: (f_out, f_in)  [PyTorch nn.Linear layout],
              b: (f_out, 1)
    Returns:
      (B, D) float32
    """
    B, D = x.shape
    npd = h.shape[1] // D
    f_in = 1 + npd
    N = B * D

    # --- glue: build x_he^T (features on sublanes, samples on lanes) ---
    # Column n = b*D + d holds [x[b,d], h[b, 0*D+d], ..., h[b, (npd-1)*D+d]],
    # identical row ordering to the PyTorch cat/view/transpose/reshape.
    hT = jnp.transpose(h.reshape(B, npd, D), (1, 0, 2)).reshape(npd, N)
    x_he_T = jnp.concatenate([x.reshape(1, N), hT], axis=0)          # (f_in, N)

    # Lane alignment: pad only if N is not a multiple of 128.
    Np = ((N + 127) // 128) * 128
    if Np != N:
        x_he_T = jnp.pad(x_he_T, ((0, 0), (0, Np - N)))

    tile_n = min(max_tile_n, Np)          # multiple of 128 by construction
    grid = pl.cdiv(Np, tile_n)            # partial last block handled by the pipeline

    n_layers = len(params)
    kernel = _make_mlp_kernel(n_layers)

    # BlockSpecs: lane tiles for the activations, full (resident) blocks for weights/biases.
    in_specs = [pl.BlockSpec((f_in, tile_n), lambda i: (0, i))]
    flat_params = []
    for (W, b) in params:
        in_specs.append(pl.BlockSpec(W.shape, lambda i: (0, 0)))
        in_specs.append(pl.BlockSpec(b.shape, lambda i: (0, 0)))
        flat_params.extend([W, b])

    flops = 2 * N * sum(W.shape[0] * W.shape[1] for W, _ in params)
    param_bytes = sum(W.size + b.size for W, b in params) * 4
    cost = pl.CostEstimate(
        flops=flops,
        transcendentals=N,
        bytes_accessed=(f_in * Np + Np) * 4 + param_bytes,
    )

    out = pl.pallas_call(
        kernel,
        out_shape=jax.ShapeDtypeStruct((1, Np), jnp.float32),
        grid_spec=pltpu.PrefetchScalarGridSpec(
            num_scalar_prefetch=0,
            grid=(grid,),
            in_specs=in_specs,
            out_specs=pl.BlockSpec((1, tile_n), lambda i: (0, i)),
        ),
        compiler_params=pltpu.CompilerParams(
            dimension_semantics=("parallel",),
        ),
        cost_estimate=cost,
    )(x_he_T, *flat_params)

    # TODO(synk): the concat/transpose glue above could be fused into the kernel with a
    # per-tile (k, npd, D) h BlockSpec when tile_n is a multiple of D; kept in XLA for clarity.
    return out[0, :N].reshape(B, D)


def integrand_net_ref(x, h, params):
    """Pure-JAX reference (mirrors the PyTorch forward)."""
    B, D = x.shape
    npd = h.shape[1] // D
    stacked = jnp.concatenate([x[:, None, :], h.reshape(B, npd, D)], axis=1)
    a = jnp.transpose(stacked, (0, 2, 1)).reshape(B * D, 1 + npd)
    n_layers = len(params)
    for li, (W, b) in enumerate(params):
        a = a @ W.T + b[:, 0]
        if li < n_layers - 1:
            a = jnp.maximum(a, 0.0)
        else:
            a = jnp.where(a > 0.0, a, jnp.exp(jnp.minimum(a, 0.0)) - 1.0) + 1.05
    return a.reshape(B, D)


def init_params(key, n_param_per_dim, hidden_dim):
    """Deterministic nn.Linear-style init; W stored as (f_out, f_in), b as (f_out, 1)."""
    l1 = [1 + n_param_per_dim] + list(hidden_dim)
    l2 = list(hidden_dim) + [1]
    params = []
    for f_in, f_out in zip(l1, l2):
        key, kw, kb = jax.random.split(key, 3)
        bound = 1.0 / jnp.sqrt(jnp.float32(f_in))
        W = jax.random.uniform(kw, (f_out, f_in), jnp.float32, -bound, bound)
        b = jax.random.uniform(kb, (f_out, 1), jnp.float32, -bound, bound)
        params.append((W, b))
    return params


if __name__ == "__main__":
    # Small shapes consistent with the module's forward:
    #   batch B=16, flow dimension D=8, n_param_per_dim=3, hidden=(32, 32)
    B, D = 16, 8
    n_param_per_dim = 3
    hidden_dim = (32, 32)

    key = jax.random.PRNGKey(0)
    kx, kh, kp = jax.random.split(key, 3)
    x = jax.random.normal(kx, (B, D), jnp.float32)
    h = jax.random.normal(kh, (B, D * n_param_per_dim), jnp.float32)
    params = init_params(kp, n_param_per_dim, hidden_dim)

    y = integrand_net_pallas(x, h, params)
    y = jax.block_until_ready(y)

    y_ref = integrand_net_ref(x, h, params)
    assert y.shape == (B, D)
    assert jnp.allclose(y, y_ref, atol=1e-5, rtol=1e-5), "mismatch vs reference"

    print("KERNEL_OK")
</pallas_src>

<mosaic_0001>
module attributes {stable_mosaic.version = 11 : i64} {
  func.func @kernel(%arg0: i32, %arg1: memref<4x128xf32, #tpu.memory_space<vmem>>, %arg2: memref<32x4xf32, #tpu.memory_space<vmem>>, %arg3: memref<32x1xf32, #tpu.memory_space<vmem>>, %arg4: memref<32x32xf32, #tpu.memory_space<vmem>>, %arg5: memref<32x1xf32, #tpu.memory_space<vmem>>, %arg6: memref<1x32xf32, #tpu.memory_space<vmem>>, %arg7: memref<1x1xf32, #tpu.memory_space<vmem>>, %arg8: memref<1x128xf32, #tpu.memory_space<vmem>>) attributes {dimension_semantics = [#tpu.dimension_semantics<parallel>], iteration_bounds = array<i64: 1>, scalar_prefetch = 0 : i64, scratch_operands = 0 : i64, tpu.core_type = #tpu.core_type<tc>, window_params = [{transform_indices = @transform_0, window_bounds = array<i64: 4, 128>}, {pipeline_mode = #tpu.pipeline_mode<synchronous>, transform_indices = @transform_1, window_bounds = array<i64: 32, 4>}, {pipeline_mode = #tpu.pipeline_mode<synchronous>, transform_indices = @transform_2, window_bounds = array<i64: 32, 1>}, {pipeline_mode = #tpu.pipeline_mode<synchronous>, transform_indices = @transform_3, window_bounds = array<i64: 32, 32>}, {pipeline_mode = #tpu.pipeline_mode<synchronous>, transform_indices = @transform_4, window_bounds = array<i64: 32, 1>}, {pipeline_mode = #tpu.pipeline_mode<synchronous>, transform_indices = @transform_5, window_bounds = array<i64: 1, 32>}, {pipeline_mode = #tpu.pipeline_mode<synchronous>, transform_indices = @transform_6, window_bounds = array<i64: 1, 1>}, {transform_indices = @transform_7, window_bounds = array<i64: 1, 128>}]} {
    %c0 = arith.constant 0 : index
    %c0_0 = arith.constant 0 : index
    %0 = vector.load %arg2[%c0, %c0_0] : memref<32x4xf32, #tpu.memory_space<vmem>>, vector<32x4xf32>
    %c0_1 = arith.constant 0 : index
    %c0_2 = arith.constant 0 : index
    %1 = vector.load %arg4[%c0_1, %c0_2] : memref<32x32xf32, #tpu.memory_space<vmem>>, vector<32x32xf32>
    %c0_3 = arith.constant 0 : index
    %c0_4 = arith.constant 0 : index
    %2 = vector.load %arg6[%c0_3, %c0_4] : memref<1x32xf32, #tpu.memory_space<vmem>>, vector<1x32xf32>
    %c0_5 = arith.constant 0 : index
    %c0_6 = arith.constant 0 : index
    %3 = vector.load %arg3[%c0_5, %c0_6] : memref<32x1xf32, #tpu.memory_space<vmem>>, vector<32x1xf32>
    %c0_7 = arith.constant 0 : index
    %c0_8 = arith.constant 0 : index
    %4 = vector.load %arg5[%c0_7, %c0_8] : memref<32x1xf32, #tpu.memory_space<vmem>>, vector<32x1xf32>
    %c0_9 = arith.constant 0 : index
    %c0_10 = arith.constant 0 : index
    %5 = vector.load %arg7[%c0_9, %c0_10] : memref<1x1xf32, #tpu.memory_space<vmem>>, vector<1x1xf32>
    %c0_11 = arith.constant 0 : index
    %c0_12 = arith.constant 0 : index
    %6 = vector.load %arg1[%c0_11, %c0_12] : memref<4x128xf32, #tpu.memory_space<vmem>>, vector<4x128xf32>
    %cst = arith.constant dense<0.000000e+00> : vector<32x128xf32>
    %7 = tpu.matmul %0, %6, %cst {dimension_numbers = #tpu.dot_dimension_numbers<[1], [0], [0], [1], [0, 0, 1, 1], [], []>} : vector<32x4xf32>, vector<4x128xf32>, vector<32x128xf32> -> vector<32x128xf32>
    %8 = vector.broadcast %3 : vector<32x1xf32> to vector<32x128xf32>
    %9 = arith.addf %7, %8 : vector<32x128xf32>
    %cst_13 = arith.constant 0.000000e+00 : f32
    %10 = vector.broadcast %cst_13 : f32 to vector<32x128xf32>
    %11 = arith.maximumf %9, %10 : vector<32x128xf32>
    %cst_14 = arith.constant dense<0.000000e+00> : vector<32x128xf32>
    %12 = tpu.matmul %1, %11, %cst_14 {dimension_numbers = #tpu.dot_dimension_numbers<[1], [0], [0], [1], [0, 0, 1, 1], [], []>} : vector<32x32xf32>, vector<32x128xf32>, vector<32x128xf32> -> vector<32x128xf32>
    %13 = vector.broadcast %4 : vector<32x1xf32> to vector<32x128xf32>
    %14 = arith.addf %12, %13 : vector<32x128xf32>
    %cst_15 = arith.constant 0.000000e+00 : f32
    %15 = vector.broadcast %cst_15 : f32 to vector<32x128xf32>
    %16 = arith.maximumf %14, %15 : vector<32x128xf32>
    %cst_16 = arith.constant dense<0.000000e+00> : vector<1x128xf32>
    %17 = tpu.matmul %2, %16, %cst_16 {dimension_numbers = #tpu.dot_dimension_numbers<[1], [0], [0], [1], [0, 0, 1, 1], [], []>} : vector<1x32xf32>, vector<32x128xf32>, vector<1x128xf32> -> vector<1x128xf32>
    %18 = vector.broadcast %5 : vector<1x1xf32> to vector<1x128xf32>
    %19 = arith.addf %17, %18 : vector<1x128xf32>
    %cst_17 = arith.constant 0.000000e+00 : f32
    %20 = vector.broadcast %cst_17 : f32 to vector<1x128xf32>
    %21 = arith.cmpf ogt, %19, %20 : vector<1x128xf32>
    %cst_18 = arith.constant 0.000000e+00 : f32
    %22 = vector.broadcast %cst_18 : f32 to vector<1x128xf32>
    %23 = arith.minimumf %19, %22 : vector<1x128xf32>
    %24 = math.exp %23 : vector<1x128xf32>
    %cst_19 = arith.constant 1.000000e+00 : f32
    %25 = vector.broadcast %cst_19 : f32 to vector<1x128xf32>
    %26 = arith.subf %24, %25 : vector<1x128xf32>
    %27 = arith.select %21, %19, %26 : vector<1x128xi1>, vector<1x128xf32>
    %cst_20 = arith.constant 1.050000e+00 : f32
    %28 = vector.broadcast %cst_20 : f32 to vector<1x128xf32>
    %29 = arith.addf %27, %28 : vector<1x128xf32>
    %c0_21 = arith.constant 0 : index
    %c0_22 = arith.constant 0 : index
    %30 = vector.load %arg8[%c0_21, %c0_22] : memref<1x128xf32, #tpu.memory_space<vmem>>, vector<1x128xf32>
    tpu.vector_store %arg8[%c0_21, %c0_22], %29 {strides = array<i32>} : memref<1x128xf32, #tpu.memory_space<vmem>>, vector<1x128xf32>,
    return
  }
  func.func @transform_0(%arg0: i32) -> (i32, i32) {
    %c0_i32 = arith.constant 0 : i32
    %c0_i32_0 = arith.constant 0 : i32
    return %c0_i32, %arg0 : i32, i32
  }
  func.func @transform_1(%arg0: i32) -> (i32, i32) {
    %c0_i32 = arith.constant 0 : i32
    %c0_i32_0 = arith.constant 0 : i32
    %c0_i32_1 = arith.constant 0 : i32
    return %c0_i32, %c0_i32_0 : i32, i32
  }
  func.func @transform_2(%arg0: i32) -> (i32, i32) {
    %c0_i32 = arith.constant 0 : i32
    %c0_i32_0 = arith.constant 0 : i32
    %c0_i32_1 = arith.constant 0 : i32
    return %c0_i32, %c0_i32_0 : i32, i32
  }
  func.func @transform_3(%arg0: i32) -> (i32, i32) {
    %c0_i32 = arith.constant 0 : i32
    %c0_i32_0 = arith.constant 0 : i32
    %c0_i32_1 = arith.constant 0 : i32
    return %c0_i32, %c0_i32_0 : i32, i32
  }
  func.func @transform_4(%arg0: i32) -> (i32, i32) {
    %c0_i32 = arith.constant 0 : i32
    %c0_i32_0 = arith.constant 0 : i32
    %c0_i32_1 = arith.constant 0 : i32
    return %c0_i32, %c0_i32_0 : i32, i32
  }
  func.func @transform_5(%arg0: i32) -> (i32, i32) {
    %c0_i32 = arith.constant 0 : i32
    %c0_i32_0 = arith.constant 0 : i32
    %c0_i32_1 = arith.constant 0 : i32
    return %c0_i32, %c0_i32_0 : i32, i32
  }
  func.func @transform_6(%arg0: i32) -> (i32, i32) {
    %c0_i32 = arith.constant 0 : i32
    %c0_i32_0 = arith.constant 0 : i32
    %c0_i32_1 = arith.constant 0 : i32
    return %c0_i32, %c0_i32_0 : i32, i32
  }
  func.func @transform_7(%arg0: i32) -> (i32, i32) {
    %c0_i32 = arith.constant 0 : i32
    %c0_i32_0 = arith.constant 0 : i32
    return %c0_i32, %arg0 : i32, i32
  }
}

</mosaic_0001>

<llo_original>
// kernel: tpu_custom_call.1
$region0: #{tpu_custom_call.1}
  #allocation0 [shape = 'u32[]', space=smem, size = 0x4, offset = 0x4, fixed_abs, tag = 'smem constant byte address 0x4 - core index']
  #allocation1 [shape = 'u32[144,128]{1,0:T(1,128)}', space=vmem, size = 0x12000, scoped, tag = 'internal scratch']
  #allocation2 [shape = 'f32[1,1]{1,0:T(1,128)S(1)}', space=vmem, size = 0x200, scoped, tag = 'scoped memory for tpu_custom_call.1']
  %s0 = inlined_call_operand.vmem [shape: f32[4,128], index: 0, kind: input, shape index: {}]
  %s1 = inlined_call_operand.vmem [shape: f32[32,4], index: 1, kind: input, shape index: {}]
  %s2 = inlined_call_operand.vmem [shape: f32[32,1], index: 2, kind: input, shape index: {}]
  %s3 = inlined_call_operand.vmem [shape: f32[32,32], index: 3, kind: input, shape index: {}]
  %s4 = inlined_call_operand.vmem [shape: f32[32,1], index: 4, kind: input, shape index: {}]
  %s5 = inlined_call_operand.vmem [shape: f32[1,32], index: 5, kind: input, shape index: {}]
  %s6 = inlined_call_operand.<no memory space> [shape: f32[1,1], index: 6, kind: input, shape index: {}]
  %s7 = inlined_call_operand.hbm [shape: f32[1,128], index: 7, kind: output, shape index: {}]
  %s8 = sld [smem:[#allocation0]]
  $region38: #{tpu_custom_call.1} parent=0
    _
  %s10 = ssub.s32 1, %s8
  %s11 = scalar_select 0, %s10, %s8
  %v12 = vstv %s6
  %13 = vst [vmem:[#allocation2] sm:$0x1] %v12
  $region1: #{tpu_custom_call.1} parent=0
    #allocation3 [shape = 'u8[512]{0}', space=vmem, size = 0x400, scoped, tag = 'output window, operand 0, single buffered']
    #allocation4 [shape = 's32[1]{0}', space=sflag, size = 0x4, scoped, tag = 'scoped memory for tpu_custom_call.1']
    %14 = vsyncpa [#allocation4], 0
    // Predicated region
    $region2: #{tpu_custom_call.1} parent=1 // pred_check
      _
    $region3: #{tpu_custom_call.1} parent=1 // pred_check_branch
      %16 = sbr.rel (0) target = $region5
    $region4: #{tpu_custom_call.1} parent=1 // pred_region
      _
    $region5: #{tpu_custom_call.1} parent=1 // pred_fallthru
      _
    // Predicated region
    $region6: #{tpu_custom_call.1} parent=1 // pred_check
      _
    $region7: #{tpu_custom_call.1} parent=1 // pred_check_branch
      %18 = sbr.rel (0) target = $region9
    $region8: #{tpu_custom_call.1} parent=1 // pred_region
      _
    $region9: #{tpu_custom_call.1} parent=1 // pred_fallthru
      _
    // Predicated region
    $region10: #{tpu_custom_call.1} parent=1 // pred_check
      _
    $region11: #{tpu_custom_call.1} parent=1 // pred_check_branch
      %20 = sbr.rel (0) target = $region13
    $region12: #{tpu_custom_call.1} parent=1 // pred_region
      _
    $region13: #{tpu_custom_call.1} parent=1 // pred_fallthru
      _
    // Predicated region
    $region14: #{tpu_custom_call.1} parent=1 // pred_check
      _
    $region15: #{tpu_custom_call.1} parent=1 // pred_check_branch
      %22 = sbr.rel (0) target = $region17
    $region16: #{tpu_custom_call.1} parent=1 // pred_region
      _
    $region17: #{tpu_custom_call.1} parent=1 // pred_fallthru
      _
    // Predicated region
    $region18: #{tpu_custom_call.1} parent=1 // pred_check
      _
    $region19: #{tpu_custom_call.1} parent=1 // pred_check_branch
      %24 = sbr.rel (0) target = $region21
    $region20: #{tpu_custom_call.1} parent=1 // pred_region
      _
    $region21: #{tpu_custom_call.1} parent=1 // pred_fallthru
      _
    // Predicated region
    $region22: #{tpu_custom_call.1} parent=1 // pred_check
      _
    $region23: #{tpu_custom_call.1} parent=1 // pred_check_branch
      %26 = sbr.rel (0) target = $region25
    $region24: #{tpu_custom_call.1} parent=1 // pred_region
      _
    $region25: #{tpu_custom_call.1} parent=1 // pred_fallthru
      _
    // Predicated region
    $region26: #{tpu_custom_call.1} parent=1 // pred_check
      _
    $region27: #{tpu_custom_call.1} parent=1 // pred_check_branch
      %28 = sbr.rel (0) target = $region29
    $region28: #{tpu_custom_call.1} parent=1 // pred_region
      _
    $region29: #{tpu_custom_call.1} parent=1 // pred_fallthru
      _
    %v29 = vld [vmem:[%s1] sm:$0xff]
    %v30 = vld [vmem:[%s1 + $0x8] sm:$0xff]
    %v31 = vld [vmem:[%s1 + $0x10] sm:$0xff]
    %v32 = vld [vmem:[%s1 + $0x18] sm:$0xff]
    %v33 = vld [vmem:[%s3] sm:$0xff]
    %v34 = vld [vmem:[%s3 + $0x8] sm:$0xff]
    %v35 = vld [vmem:[%s3 + $0x10] sm:$0xff]
    %v36 = vld [vmem:[%s3 + $0x18] sm:$0xff]
    %v37 = vld [vmem:[%s5] sm:$0x1]
    %v38 = vld [vmem:[%s2] sm:$0xff]
    %v39 = vld [vmem:[%s2 + $0x8] sm:$0xff]
    %v40 = vld [vmem:[%s2 + $0x10] sm:$0xff]
    %v41 = vld [vmem:[%s2 + $0x18] sm:$0xff]
    %v42 = vld [vmem:[%s4] sm:$0xff]
    %v43 = vld [vmem:[%s4 + $0x8] sm:$0xff]
    %v44 = vld [vmem:[%s4 + $0x10] sm:$0xff]
    %v45 = vld [vmem:[%s4 + $0x18] sm:$0xff]
    %v46 = vld [vmem:[#allocation2] sm:$0x1]
    %v47 = vld [vmem:[%s0] sm:$0xf]
    %49 = vset.pattern.permute.xlu0 0
    %50 = vperm.xlu0 %49, %v38
    %v51 = vpop.permute.xlu0 %50
    %54 = vset.pattern.permute.xlu0 0
    %55 = vperm.xlu0 %54, %v39
    %v56 = vpop.permute.xlu0 %55
    %59 = vset.pattern.permute.xlu0 0
    %60 = vperm.xlu0 %59, %v40
    %v61 = vpop.permute.xlu0 %60
    %64 = vset.pattern.permute.xlu0 0
    %65 = vperm.xlu0 %64, %v41
    %v66 = vpop.permute.xlu0 %65
    %vm68 = vcmask 31744
    %v70 = vsel %vm68, %v29, 0
    %v73 = vsel %vm68, %v30, 0
    %v76 = vsel %vm68, %v31, 0
    %v79 = vsel %vm68, %v32, 0
    %vm81 = vcmask 1043456
    %v83 = vsel %vm81, %v47, 0
    %85 = vmatprep.subr.mxu0 0.0
    %86 = vmatpush1.msra.mxu0 %v83
    %87 = vmatprep.subr.mxu0 0.0
    %88 = vmatpush1.msra.mxu0 0.0
    %89 = vmatprep.subr.mxu0 0.0
    %90 = vmatpush1.msra.mxu0 0.0
    %91 = vmatprep.subr.mxu0 0.0
    %92 = vmatpush1.msra.mxu0 0.0
    %93 = vmatprep.subr.mxu0 0.0
    %94 = vmatpush1.msra.mxu0 0.0
    %95 = vmatprep.subr.mxu0 0.0
    %96 = vmatpush1.msra.mxu0 0.0
    %97 = vmatprep.subr.mxu0 0.0
    %98 = vmatpush1.msra.mxu0 0.0
    %99 = vmatprep.subr.mxu0 0.0
    %100 = vmatpush1.msra.mxu0 0.0
    %101 = vmatprep.subr.mxu0 0.0
    %102 = vmatpush1.msra.mxu0 0.0
    %103 = vmatprep.subr.mxu0 0.0
    %104 = vmatpush1.msra.mxu0 0.0
    %105 = vmatprep.subr.mxu0 0.0
    %106 = vmatpush1.msra.mxu0 0.0
    %107 = vmatprep.subr.mxu0 0.0
    %108 = vmatpush1.msra.mxu0 0.0
    %109 = vmatprep.subr.mxu0 0.0
    %110 = vmatpush1.msra.mxu0 0.0
    %111 = vmatprep.subr.mxu0 0.0
    %112 = vmatpush1.msra.mxu0 0.0
    %113 = vmatprep.subr.mxu0 0.0
    %114 = vmatpush1.msra.mxu0 0.0
    %115 = vmatprep.subr.mxu0 0.0
    %116 = vmatpush1.msra.mxu0 0.0
    %117 = vmatprep.subr.mxu0 0.0
    %118 = vmatpush1.msra.mxu0 0.0
    %119 = vmatprep.subr.mxu0 0.0
    %120 = vmatpush1.msra.mxu0 0.0
    %121 = vmatprep.subr.mxu0 0.0
    %122 = vmatpush1.msra.mxu0 0.0
    %123 = vmatprep.subr.mxu0 0.0
    %124 = vmatpush1.msra.mxu0 0.0
    %125 = vmatprep.subr.mxu0 0.0
    %126 = vmatpush1.msra.mxu0 0.0
    %127 = vmatprep.subr.mxu0 0.0
    %128 = vmatpush1.msra.mxu0 0.0
    %129 = vmatprep.subr.mxu0 0.0
    %130 = vmatpush1.msra.mxu0 0.0
    %131 = vmatprep.subr.mxu0 0.0
    %132 = vmatpush1.msra.mxu0 0.0
    %133 = vmatprep.subr.mxu0 0.0
    %134 = vmatpush1.msra.mxu0 0.0
    %135 = vmatprep.subr.mxu0 0.0
    %136 = vmatpush1.msra.mxu0 0.0
    %137 = vmatprep.subr.mxu0 0.0
    %138 = vmatpush1.msra.mxu0 0.0
    %139 = vmatprep.subr.mxu0 0.0
    %140 = vmatpush1.msra.mxu0 0.0
    %141 = vmatprep.subr.mxu0 0.0
    %142 = vmatpush1.msra.mxu0 0.0
    %143 = vmatprep.subr.mxu0 0.0
    %144 = vmatpush1.msra.mxu0 0.0
    %145 = vmatprep.subr.mxu0 0.0
    %146 = vmatpush1.msra.mxu0 0.0
    %147 = vmatprep.subr.mxu0 0.0
    %148 = vmatpush1.msra.mxu0 0.0
    %149 = vmatprep.mubr.f32.mxu0 0.0
    %150 = vmatmul.mubr.f32.gmra.mrb[0].mxu0 %v70
    %v151 = vpop.f32.mrb[0].mxu0
    %v152 = vadd.f32 %v51, %v151
    %v153 = vpop.f32.mrb[0].mxu0
    %154 = vmatprep.mubr.f32.mxu0 0.0
    %155 = vmatmul.mubr.f32.gmra.mrb[0].mxu0 %v73
    %v156 = vpop.f32.mrb[0].mxu0
    %v157 = vadd.f32 %v56, %v156
    %v158 = vpop.f32.mrb[0].mxu0
    %159 = vmatprep.mubr.f32.mxu0 0.0
    %160 = vmatmul.mubr.f32.gmra.mrb[0].mxu0 %v76
    %v161 = vpop.f32.mrb[0].mxu0
    %v162 = vadd.f32 %v61, %v161
    %v163 = vpop.f32.mrb[0].mxu0
    %164 = vmatprep.mubr.f32.mxu0 0.0
    %165 = vmatmul.mubr.f32.gmra.mrb[0].mxu0 %v79
    %v166 = vpop.f32.mrb[0].mxu0
    %v167 = vadd.f32 %v66, %v166
    %v168 = vpop.f32.mrb[0].mxu0
    %169 = vdwg.mxu0
    %v170 = vmax.f32 %v152, 0.0
    %v171 = vmax.f32 %v157, 0.0
    %v172 = vmax.f32 %v162, 0.0
    %v173 = vmax.f32 %v167, 0.0
    %175 = vset.pattern.permute.xlu0 0
    %176 = vperm.xlu0 %175, %v42
    %v177 = vpop.permute.xlu0 %176
    %180 = vset.pattern.permute.xlu0 0
    %181 = vperm.xlu0 %180, %v43
    %v182 = vpop.permute.xlu0 %181
    %185 = vset.pattern.permute.xlu0 0
    %186 = vperm.xlu0 %185, %v44
    %v187 = vpop.permute.xlu0 %186
    %190 = vset.pattern.permute.xlu0 0
    %191 = vperm.xlu0 %190, %v45
    %v192 = vpop.permute.xlu0 %191
    %vm194 = vcmask 261120
    %v196 = vsel %vm194, %v33, 0
    %v199 = vsel %vm194, %v34, 0
    %v202 = vsel %vm194, %v35, 0
    %v205 = vsel %vm194, %v36, 0
    %207 = vmatprep.subr.mxu0 0.0
    %208 = vmatpush1.msra.mxu0 %v170
    %209 = vmatprep.subr.mxu0 0.0
    %210 = vmatpush1.msra.mxu0 %v171
    %211 = vmatprep.subr.mxu0 0.0
    %212 = vmatpush1.msra.mxu0 %v172
    %213 = vmatprep.subr.mxu0 0.0
    %214 = vmatpush1.msra.mxu0 %v173
    %215 = vmatprep.subr.mxu0 0.0
    %216 = vmatpush1.msra.mxu0 0.0
    %217 = vmatprep.subr.mxu0 0.0
    %218 = vmatpush1.msra.mxu0 0.0
    %219 = vmatprep.subr.mxu0 0.0
    %220 = vmatpush1.msra.mxu0 0.0
    %221 = vmatprep.subr.mxu0 0.0
    %222 = vmatpush1.msra.mxu0 0.0
    %223 = vmatprep.subr.mxu0 0.0
    %224 = vmatpush1.msra.mxu0 0.0
    %225 = vmatprep.subr.mxu0 0.0
    %226 = vmatpush1.msra.mxu0 0.0
    %227 = vmatprep.subr.mxu0 0.0
    %228 = vmatpush1.msra.mxu0 0.0
    %229 = vmatprep.subr.mxu0 0.0
    %230 = vmatpush1.msra.mxu0 0.0
    %231 = vmatprep.subr.mxu0 0.0
    %232 = vmatpush1.msra.mxu0 0.0
    %233 = vmatprep.subr.mxu0 0.0
    %234 = vmatpush1.msra.mxu0 0.0
    %235 = vmatprep.subr.mxu0 0.0
    %236 = vmatpush1.msra.mxu0 0.0
    %237 = vmatprep.subr.mxu0 0.0
    %238 = vmatpush1.msra.mxu0 0.0
    %239 = vmatprep.subr.mxu0 0.0
    %240 = vmatpush1.msra.mxu0 0.0
    %241 = vmatprep.subr.mxu0 0.0
    %242 = vmatpush1.msra.mxu0 0.0
    %243 = vmatprep.subr.mxu0 0.0
    %244 = vmatpush1.msra.mxu0 0.0
    %245 = vmatprep.subr.mxu0 0.0
    %246 = vmatpush1.msra.mxu0 0.0
    %247 = vmatprep.subr.mxu0 0.0
    %248 = vmatpush1.msra.mxu0 0.0
    %249 = vmatprep.subr.mxu0 0.0
    %250 = vmatpush1.msra.mxu0 0.0
    %251 = vmatprep.subr.mxu0 0.0
    %252 = vmatpush1.msra.mxu0 0.0
    %253 = vmatprep.subr.mxu0 0.0
    %254 = vmatpush1.msra.mxu0 0.0
    %255 = vmatprep.subr.mxu0 0.0
    %256 = vmatpush1.msra.mxu0 0.0
    %257 = vmatprep.subr.mxu0 0.0
    %258 = vmatpush1.msra.mxu0 0.0
    %259 = vmatprep.subr.mxu0 0.0
    %260 = vmatpush1.msra.mxu0 0.0
    %261 = vmatprep.subr.mxu0 0.0
    %262 = vmatpush1.msra.mxu0 0.0
    %263 = vmatprep.subr.mxu0 0.0
    %264 = vmatpush1.msra.mxu0 0.0
    %265 = vmatprep.subr.mxu0 0.0
    %266 = vmatpush1.msra.mxu0 0.0
    %267 = vmatprep.subr.mxu0 0.0
    %268 = vmatpush1.msra.mxu0 0.0
    %269 = vmatprep.subr.mxu0 0.0
    %270 = vmatpush1.msra.mxu0 0.0
    %271 = vmatprep.mubr.f32.mxu0 0.0
    %272 = vmatmul.mubr.f32.gmra.mrb[0].mxu0 %v196
    %v273 = vpop.f32.mrb[0].mxu0
    %v274 = vadd.f32 %v177, %v273
    %v275 = vpop.f32.mrb[0].mxu0
    %276 = vmatprep.mubr.f32.mxu0 0.0
    %277 = vmatmul.mubr.f32.gmra.mrb[0].mxu0 %v199
    %v278 = vpop.f32.mrb[0].mxu0
    %v279 = vadd.f32 %v182, %v278
    %v280 = vpop.f32.mrb[0].mxu0
    %281 = vmatprep.mubr.f32.mxu0 0.0
    %282 = vmatmul.mubr.f32.gmra.mrb[0].mxu0 %v202
    %v283 = vpop.f32.mrb[0].mxu0
    %v284 = vadd.f32 %v187, %v283
    %v285 = vpop.f32.mrb[0].mxu0
    %286 = vmatprep.mubr.f32.mxu0 0.0
    %287 = vmatmul.mubr.f32.gmra.mrb[0].mxu0 %v205
    %v288 = vpop.f32.mrb[0].mxu0
    %v289 = vadd.f32 %v192, %v288
    %v290 = vpop.f32.mrb[0].mxu0
    %291 = vdwg.mxu0
    %v292 = vmax.f32 %v274, 0.0
    %v293 = vmax.f32 %v279, 0.0
    %v294 = vmax.f32 %v284, 0.0
    %v295 = vmax.f32 %v289, 0.0
    %297 = vset.pattern.permute.xlu0 0
    %298 = vperm.xlu0 %297, %v46
    %v299 = vpop.permute.xlu0 %298
    %v301 = vlaneseq
    %v302 = vshrl.u32 %v301, 7
    %v303 = vsub.s32 0, %v302
    %v304 = vrot.slane %v299, %v303
    %v306 = vsel %vm194, %v37, 0
    %308 = vmatprep.subr.mxu0 0.0
    %309 = vmatpush1.msra.mxu0 %v292
    %310 = vmatprep.subr.mxu0 0.0
    %311 = vmatpush1.msra.mxu0 %v293
    %312 = vmatprep.subr.mxu0 0.0
    %313 = vmatpush1.msra.mxu0 %v294
    %314 = vmatprep.subr.mxu0 0.0
    %315 = vmatpush1.msra.mxu0 %v295
    %316 = vmatprep.subr.mxu0 0.0
    %317 = vmatpush1.msra.mxu0 0.0
    %318 = vmatprep.subr.mxu0 0.0
    %319 = vmatpush1.msra.mxu0 0.0
    %320 = vmatprep.subr.mxu0 0.0
    %321 = vmatpush1.msra.mxu0 0.0
    %322 = vmatprep.subr.mxu0 0.0
    %323 = vmatpush1.msra.mxu0 0.0
    %324 = vmatprep.subr.mxu0 0.0
    %325 = vmatpush1.msra.mxu0 0.0
    %326 = vmatprep.subr.mxu0 0.0
    %327 = vmatpush1.msra.mxu0 0.0
    %328 = vmatprep.subr.mxu0 0.0
    %329 = vmatpush1.msra.mxu0 0.0
    %330 = vmatprep.subr.mxu0 0.0
    %331 = vmatpush1.msra.mxu0 0.0
    %332 = vmatprep.subr.mxu0 0.0
    %333 = vmatpush1.msra.mxu0 0.0
    %334 = vmatprep.subr.mxu0 0.0
    %335 = vmatpush1.msra.mxu0 0.0
    %336 = vmatprep.subr.mxu0 0.0
    %337 = vmatpush1.msra.mxu0 0.0
    %338 = vmatprep.subr.mxu0 0.0
    %339 = vmatpush1.msra.mxu0 0.0
    %340 = vmatprep.subr.mxu0 0.0
    %341 = vmatpush1.msra.mxu0 0.0
    %342 = vmatprep.subr.mxu0 0.0
    %343 = vmatpush1.msra.mxu0 0.0
    %344 = vmatprep.subr.mxu0 0.0
    %345 = vmatpush1.msra.mxu0 0.0
    %346 = vmatprep.subr.mxu0 0.0
    %347 = vmatpush1.msra.mxu0 0.0
    %348 = vmatprep.subr.mxu0 0.0
    %349 = vmatpush1.msra.mxu0 0.0
    %350 = vmatprep.subr.mxu0 0.0
    %351 = vmatpush1.msra.mxu0 0.0
    %352 = vmatprep.subr.mxu0 0.0
    %353 = vmatpush1.msra.mxu0 0.0
    %354 = vmatprep.subr.mxu0 0.0
    %355 = vmatpush1.msra.mxu0 0.0
    %356 = vmatprep.subr.mxu0 0.0
    %357 = vmatpush1.msra.mxu0 0.0
    %358 = vmatprep.subr.mxu0 0.0
    %359 = vmatpush1.msra.mxu0 0.0
    %360 = vmatprep.subr.mxu0 0.0
    %361 = vmatpush1.msra.mxu0 0.0
    %362 = vmatprep.subr.mxu0 0.0
    %363 = vmatpush1.msra.mxu0 0.0
    %364 = vmatprep.subr.mxu0 0.0
    %365 = vmatpush1.msra.mxu0 0.0
    %366 = vmatprep.subr.mxu0 0.0
    %367 = vmatpush1.msra.mxu0 0.0
    %368 = vmatprep.subr.mxu0 0.0
    %369 = vmatpush1.msra.mxu0 0.0
    %370 = vmatprep.subr.mxu0 0.0
    %371 = vmatpush1.msra.mxu0 0.0
    %372 = vmatprep.mubr.f32.mxu0 0.0
    %373 = vmatmul.mubr.f32.gmra.mrb[0].mxu0 %v306
    %v374 = vpop.f32.mrb[0].mxu0
    %v375 = vadd.f32 %v304, %v374
    %v376 = vpop.f32.mrb[0].mxu0
    %377 = vdwg.mxu0
    %vm378 = vcmp.gt.f32.partialorder %v375, 0.0
    %v379 = vmin.f32 %v375, 0.0
    %v380 = vmul.f32 %v379, 1.442695
    %v381 = vpow.pop %v380
    %v382 = vsub.f32 %v381, 1.0
    %v383 = vsel %vm378, %v375, %v382
    %v384 = vadd.f32 %v383, 1.05
    %385 = vst [vmem:[#allocation3] sm:$0x1] %v384
    // Predicated region
    $region30: #{tpu_custom_call.1} parent=1 // pred_check
      _
    $region31: #{tpu_custom_call.1} parent=1 // pred_check_branch
      %387 = sbr.rel (0) target = $region33
    $region32: #{tpu_custom_call.1} parent=1 // pred_region
      %s389 = ssub.s32 16, 16
      %390 = vsyncadd [#allocation4], %s389
      %s392 = sshll.u32 [#allocation3], 4
      %s393 = int_to_ptr.vmem [resolvable:$true] %s392
      %395 = dma.vmem_to_hbm [thread:$0]  %s393, 16, %s7, [#allocation4]
    $region33: #{tpu_custom_call.1} parent=1 // pred_fallthru
      _
    // Predicated region
    $region34: #{tpu_custom_call.1} parent=1 // pred_check
      _
    $region35: #{tpu_custom_call.1} parent=1 // pred_check_branch
      %397 = sbr.rel (0) target = $region37
    $region36: #{tpu_custom_call.1} parent=1 // pred_region
      %398 = dma.done [#allocation4], 16
    $region37: #{tpu_custom_call.1} parent=1 // pred_fallthru
      _
    %399 = vsyncpa [#allocation4], 1

</llo_original>
